<compile_context>
chip_gen: v7x
topology: tpu7x:2x2x1
jax: 0.10.0
libtpu: 0.0.40
codegen_flags: <defaults>
</compile_context>

<pallas_src>
import jax
import jax.numpy as jnp
import numpy as np
from jax.experimental import pallas as pl
from jax.experimental.pallas import tpu as pltpu


def _same_pad(x, pad_l, pad_r):
    """F.pad semantics on the last dim (negative pad crops)."""
    L = x.shape[-1]
    lo = max(0, -pad_l)
    hi = L - max(0, -pad_r)
    x = x[..., lo:hi]
    return jnp.pad(x, ((0, 0), (0, 0), (max(0, pad_l), max(0, pad_r))))


def _physical_vmem_bytes():
    """Per-core VMEM capacity; conservative 64 MiB (v7x) fallback."""
    try:
        info = pltpu.get_tpu_info()
        v = getattr(info, "vmem_capacity_bytes", None)
        if v:
            return int(v)
    except Exception:
        pass
    return 64 << 20


def same_pad_conv_transpose1d(x, weight, bias, *, kernel_size, stride,
                              m_tile=1024, compute_dtype=jnp.bfloat16):
    """SamePadConvTranspose1d forward.

    x:      (N, C_in, L)         float
    weight: (C_in, C_out, K)     torch nn.ConvTranspose1d layout
    bias:   (C_out,)
    """
    N, c_in, L = x.shape
    K = int(kernel_size)
    s = int(stride)
    c_in_w, c_out, Kw = weight.shape
    assert c_in_w == c_in and Kw == K and s >= 1

    out_dtype = x.dtype
    cbytes = jnp.dtype(compute_dtype).itemsize
    obytes = jnp.dtype(out_dtype).itemsize

    # ---- SamePad (PyTorch F.pad; negative pad == crop) ------------------------
    p = K - s
    pad_l = p // 2 + p % 2
    pad_r = p // 2
    x_pad = _same_pad(x.astype(compute_dtype), pad_l, pad_r)
    L_pad = x_pad.shape[-1]
    assert L_pad >= 1

    # ConvTranspose1d(stride=s, padding=K-1) output length.
    L_out = (L_pad - 1) * s - 2 * (K - 1) + K
    assert L_out >= 1

    # ---- polyphase geometry (all compile-time Python ints) --------------------
    #   y[:, :, s*m + r] = sum_d  W[r, d] @ x_pad[:, :, m + d]
    phase = []
    B = 0
    for r in range(s):
        q = (r + K - 1) % s
        S = (r + K - 1) // s
        Kr = (K - 1 - q) // s + 1
        phase.append((q, S, Kr))
        B = max(B, S)
    w_len = B + 1                                   # window width per output pos
    halo_pad = 0 if B == 0 else ((B + 127) // 128) * 128
    w_rows = s * c_out

    # ---- output tiling + VMEM budget -------------------------------------------
    M_max = -(-L_out // s)                          # ceil(L_out / s)
    m_tile = max(128, int(m_tile))
    if m_tile % 128:
        m_tile = ((m_tile + 127) // 128) * 128
    m_tile = min(m_tile, ((M_max + 127) // 128) * 128)   # never larger than needed

    def est_vmem(mt):
        Wt = mt + halo_pad
        return (2 * c_in * Wt * cbytes              # input block (double-buffered)
                + 2 * w_len * w_rows * c_in * cbytes  # packed weights (worst case 2x)
                + 2 * w_rows * 4                    # bias
                + 2 * w_rows * mt * obytes          # output block (double-buffered)
                + 2 * w_rows * Wt * 4               # f32 accumulator + dot result
                + 2 * c_in * Wt * cbytes)           # rotated-operand temporaries

    budget = (3 * _physical_vmem_bytes()) // 4      # 48 MiB on v7x, 96 MiB on v5e/v6e
    while m_tile > 128 and est_vmem(m_tile) * 3 // 2 + (2 << 20) > budget:
        m_tile = max(128, (m_tile // 2) // 128 * 128)

    if M_max <= m_tile:
        m_tile = M_max
        T = 1
    else:
        T = -(-M_max // m_tile)
    M_total = T * m_tile
    W = m_tile + halo_pad
    vmem_limit = int(min(budget, max(16 << 20, est_vmem(m_tile) * 3 // 2 + (4 << 20))))

    # ---- host-side input restructuring: overlapped, lane-dense tiles ----------
    # Tile t holds x_pad columns [t*m_tile, t*m_tile + W); the 128-column overlap
    # replaces the old 1-2 lane halo DMA and the masked seam stores.
    Lx = M_total + halo_pad
    if Lx >= L_pad:
        x_ext = jnp.pad(x_pad, ((0, 0), (0, 0), (0, Lx - L_pad)))
    else:
        # dropped columns only feed output positions that are cropped below
        x_ext = x_pad[:, :, :Lx]
    x_tiles = jnp.stack(
        [x_ext[:, :, t * m_tile:t * m_tile + W] for t in range(T)], axis=1)
    # (N, T, c_in, W), compute dtype

    # ---- host-prepacked per-offset weights: (w_len, s*C_out, C_in) ------------
    # Block d, row group r: the tap phase r has at window offset d (zeros if none;
    # zeros are exact in bf16).
    per_d = []
    for d in range(w_len):
        rows = []
        for r in range(s):
            q, S, Kr = phase[r]
            j = S - d
            if 0 <= j < Kr:
                rows.append(weight[:, :, q + j * s].T)           # (C_out, C_in)
            else:
                rows.append(jnp.zeros((c_out, c_in), weight.dtype))
        per_d.append(jnp.concatenate(rows, axis=0))              # (s*C_out, C_in)
    w_pack = jnp.stack(per_d, axis=0).astype(compute_dtype)      # (w_len, s*C_out, C_in)
    b_pack = jnp.tile(bias.reshape(1, c_out), (s, 1)).reshape(w_rows, 1)
    b_pack = b_pack.astype(jnp.float32)

    # ---- Pallas kernel: w_len accumulating MXU dots per (batch, L-tile) -------
    def kernel(x_ref, w_ref, b_ref, o_ref):
        xt = x_ref[0, 0]                                         # (c_in, W)
        acc = jnp.dot(w_ref[0], xt, preferred_element_type=jnp.float32)
        for d in range(1, w_len):
            # xd[:, m] = xt[:, m + d]; wrapped columns (m >= W - d) only feed
            # output columns >= m_tile, which are never stored.
            xd = jnp.concatenate([xt[:, d:], xt[:, :d]], axis=1)
            acc = acc + jnp.dot(w_ref[d], xd, preferred_element_type=jnp.float32)
        o_ref[0] = (acc[:, :m_tile] + b_ref[...]).astype(o_ref.dtype)

    out_raw = pl.pallas_call(
        kernel,
        out_shape=jax.ShapeDtypeStruct((N, w_rows, M_total), out_dtype),
        grid_spec=pltpu.PrefetchScalarGridSpec(
            num_scalar_prefetch=0,
            grid=(N, T),
            in_specs=[
                pl.BlockSpec((1, 1, c_in, W), lambda n, t: (n, t, 0, 0)),
                pl.BlockSpec((w_len, w_rows, c_in), lambda n, t: (0, 0, 0)),
                pl.BlockSpec((w_rows, 1), lambda n, t: (0, 0)),
            ],
            out_specs=pl.BlockSpec((1, w_rows, m_tile), lambda n, t: (n, 0, t)),
        ),
        compiler_params=pltpu.CompilerParams(
            dimension_semantics=("parallel", "parallel"),
            vmem_limit_bytes=vmem_limit,
        ),
    )(x_tiles, w_pack, b_pack)

    # ---- phase interleave + final crop -----------------------------------------
    if s == 1:
        return out_raw[:, :, :L_out]
    # TODO(synk): this transpose is one extra HBM pass over the output; doing the
    # interleave in-kernel needs a lane perfect-shuffle that Mosaic does not
    # expose cleanly, so it remains wrapper-side unless the consumer can accept
    # the (N, stride*C_out, M) layout directly.
    out = out_raw.reshape(N, s, c_out, M_total)
    out = jnp.transpose(out, (0, 2, 3, 1)).reshape(N, c_out, M_total * s)
    return out[:, :, :L_out]


def _reference(x, weight, bias, *, kernel_size, stride):
    """Pure-JAX ground truth with explicit ConvTranspose1d scatter semantics."""
    K = int(kernel_size)
    s = int(stride)
    p = K - s
    pad_l = p // 2 + p % 2
    pad_r = p // 2
    x_pad = _same_pad(x, pad_l, pad_r)
    N, c_in, Lp = x_pad.shape
    _, c_out, _ = weight.shape
    padding = K - 1
    full_len = (Lp - 1) * s + K
    out_full = jnp.zeros((N, c_out, full_len), jnp.float32)
    for l in range(Lp):
        for k in range(K):
            contrib = jnp.einsum("ni,io->no", x_pad[:, :, l], weight[:, :, k])
            out_full = out_full.at[:, :, l * s + k].add(contrib)
    out = out_full[:, :, padding: full_len - padding]
    return out + bias[None, :, None]


if __name__ == "__main__":
    key = jax.random.PRNGKey(0)
    kx, kw, kb, kx2 = jax.random.split(key, 4)

    # --- test 1/2: module's typical config (K=4, stride=2) ----------------------
    N, c_in, c_out, K, s, L = 2, 4, 8, 4, 2, 16
    x = jax.random.normal(kx, (N, c_in, L), dtype=jnp.float32)
    weight = jax.random.normal(kw, (c_in, c_out, K), dtype=jnp.float32) * 0.1
    bias = jax.random.normal(kb, (c_out,), dtype=jnp.float32) * 0.1

    ref = _reference(x, weight, bias, kernel_size=K, stride=s)

    # 1) exactness of the polyphase math (f32 compute path)
    out_f32 = same_pad_conv_transpose1d(x, weight, bias, kernel_size=K, stride=s,
                                        compute_dtype=jnp.float32)
    out_f32 = jax.block_until_ready(out_f32)
    assert out_f32.shape == (N, c_out, L * s), out_f32.shape
    np.testing.assert_allclose(np.asarray(out_f32), np.asarray(ref),
                               atol=1e-4, rtol=1e-4)

    # 2) default bf16 compute path (performance configuration)
    out_bf = jax.block_until_ready(
        same_pad_conv_transpose1d(x, weight, bias, kernel_size=K, stride=s))
    np.testing.assert_allclose(np.asarray(out_bf), np.asarray(ref),
                               atol=2e-2, rtol=2e-2)

    # --- test 3: stride=1 config (K=3), f32 exactness ---------------------------
    out1 = same_pad_conv_transpose1d(x, weight[:, :, :3], bias, kernel_size=3,
                                     stride=1, compute_dtype=jnp.float32)
    out1 = jax.block_until_ready(out1)
    ref1 = _reference(x, weight[:, :, :3], bias, kernel_size=3, stride=1)
    assert out1.shape == (N, c_out, L), out1.shape
    np.testing.assert_allclose(np.asarray(out1), np.asarray(ref1),
                               atol=1e-4, rtol=1e-4)

    # --- test 4: longer sequence exercises the overlapped multi-tile path (T>1),
    #     seam handled by the in-kernel rotation --------------------------------
    L2 = 200
    x2 = jax.random.normal(kx2, (N, c_in, L2), dtype=jnp.float32)
    out_single = jax.block_until_ready(same_pad_conv_transpose1d(
        x2, weight, bias, kernel_size=K, stride=s, m_tile=1024,
        compute_dtype=jnp.float32))
    out_tiled = jax.block_until_ready(same_pad_conv_transpose1d(
        x2, weight, bias, kernel_size=K, stride=s, m_tile=128,
        compute_dtype=jnp.float32))
    assert out_tiled.shape == (N, c_out, L2 * s), out_tiled.shape
    np.testing.assert_allclose(np.asarray(out_tiled), np.asarray(out_single),
                               atol=1e-5, rtol=1e-5)

    # default bf16 on the tiled path vs the f32 result (loose tolerance)
    out_tiled_bf = jax.block_until_ready(same_pad_conv_transpose1d(
        x2, weight, bias, kernel_size=K, stride=s, m_tile=128))
    np.testing.assert_allclose(np.asarray(out_tiled_bf), np.asarray(out_single),
                               atol=2e-2, rtol=2e-2)

    print("KERNEL_OK")
</pallas_src>

<mosaic_0001>
module attributes {stable_mosaic.version = 11 : i64} {
  func.func @kernel(%arg0: i32, %arg1: i32, %arg2: memref<1x1x4x144xf32, #tpu.memory_space<vmem>>, %arg3: memref<3x16x4xf32, #tpu.memory_space<vmem>>, %arg4: memref<16x1xf32, #tpu.memory_space<vmem>>, %arg5: memref<1x16x16xf32, #tpu.memory_space<vmem>>) attributes {dimension_semantics = [#tpu.dimension_semantics<parallel>, #tpu.dimension_semantics<parallel>], iteration_bounds = array<i64: 2, 1>, scalar_prefetch = 0 : i64, scratch_operands = 0 : i64, tpu.core_type = #tpu.core_type<tc>, window_params = [{transform_indices = @transform_0, window_bounds = array<i64: 1, 1, 4, 144>}, {pipeline_mode = #tpu.pipeline_mode<synchronous>, transform_indices = @transform_1, window_bounds = array<i64: 3, 16, 4>}, {pipeline_mode = #tpu.pipeline_mode<synchronous>, transform_indices = @transform_2, window_bounds = array<i64: 16, 1>}, {transform_indices = @transform_3, window_bounds = array<i64: 1, 16, 16>}]} {
    %c0 = arith.constant 0 : index
    %c0_0 = arith.constant 0 : index
    %c0_1 = arith.constant 0 : index
    %c0_2 = arith.constant 0 : index
    %0 = vector.load %arg2[%c0, %c0_0, %c0_1, %c0_2] : memref<1x1x4x144xf32, #tpu.memory_space<vmem>>, vector<1x1x4x144xf32>
    %1 = vector.shape_cast %0 : vector<1x1x4x144xf32> to vector<4x144xf32>
    %c0_3 = arith.constant 0 : index
    %c0_4 = arith.constant 0 : index
    %c0_5 = arith.constant 0 : index
    %2 = vector.load %arg3[%c0_3, %c0_4, %c0_5] : memref<3x16x4xf32, #tpu.memory_space<vmem>>, vector<1x16x4xf32>
    %3 = vector.shape_cast %2 : vector<1x16x4xf32> to vector<16x4xf32>
    %cst = arith.constant dense<0.000000e+00> : vector<16x144xf32>
    %4 = tpu.matmul %3, %1, %cst {dimension_numbers = #tpu.dot_dimension_numbers<[1], [0], [0], [1], [0, 0, 1, 1], [], []>} : vector<16x4xf32>, vector<4x144xf32>, vector<16x144xf32> -> vector<16x144xf32>
    %5 = vector.extract_strided_slice %1 {offsets = [0, 1], sizes = [4, 143], strides = [1, 1]} : vector<4x144xf32> to vector<4x143xf32>
    %6 = vector.extract_strided_slice %1 {offsets = [0, 0], sizes = [4, 1], strides = [1, 1]} : vector<4x144xf32> to vector<4x1xf32>
    %7 = tpu.concatenate %5, %6 in 1 : vector<4x143xf32>, vector<4x1xf32> -> vector<4x144xf32>
    %c1 = arith.constant 1 : index
    %c0_6 = arith.constant 0 : index
    %c0_7 = arith.constant 0 : index
    %8 = vector.load %arg3[%c1, %c0_6, %c0_7] : memref<3x16x4xf32, #tpu.memory_space<vmem>>, vector<1x16x4xf32>
    %9 = vector.shape_cast %8 : vector<1x16x4xf32> to vector<16x4xf32>
    %cst_8 = arith.constant dense<0.000000e+00> : vector<16x144xf32>
    %10 = tpu.matmul %9, %7, %cst_8 {dimension_numbers = #tpu.dot_dimension_numbers<[1], [0], [0], [1], [0, 0, 1, 1], [], []>} : vector<16x4xf32>, vector<4x144xf32>, vector<16x144xf32> -> vector<16x144xf32>
    %11 = arith.addf %4, %10 : vector<16x144xf32>
    %12 = vector.extract_strided_slice %1 {offsets = [0, 2], sizes = [4, 142], strides = [1, 1]} : vector<4x144xf32> to vector<4x142xf32>
    %13 = vector.extract_strided_slice %1 {offsets = [0, 0], sizes = [4, 2], strides = [1, 1]} : vector<4x144xf32> to vector<4x2xf32>
    %14 = tpu.concatenate %12, %13 in 1 : vector<4x142xf32>, vector<4x2xf32> -> vector<4x144xf32>
    %c2 = arith.constant 2 : index
    %c0_9 = arith.constant 0 : index
    %c0_10 = arith.constant 0 : index
    %15 = vector.load %arg3[%c2, %c0_9, %c0_10] : memref<3x16x4xf32, #tpu.memory_space<vmem>>, vector<1x16x4xf32>
    %16 = vector.shape_cast %15 : vector<1x16x4xf32> to vector<16x4xf32>
    %cst_11 = arith.constant dense<0.000000e+00> : vector<16x144xf32>
    %17 = tpu.matmul %16, %14, %cst_11 {dimension_numbers = #tpu.dot_dimension_numbers<[1], [0], [0], [1], [0, 0, 1, 1], [], []>} : vector<16x4xf32>, vector<4x144xf32>, vector<16x144xf32> -> vector<16x144xf32>
    %18 = arith.addf %11, %17 : vector<16x144xf32>
    %19 = vector.extract_strided_slice %18 {offsets = [0, 0], sizes = [16, 16], strides = [1, 1]} : vector<16x144xf32> to vector<16x16xf32>
    %c0_12 = arith.constant 0 : index
    %c0_13 = arith.constant 0 : index
    %20 = vector.load %arg4[%c0_12, %c0_13] : memref<16x1xf32, #tpu.memory_space<vmem>>, vector<16x1xf32>
    %21 = vector.broadcast %20 : vector<16x1xf32> to vector<16x16xf32>
    %22 = arith.addf %19, %21 : vector<16x16xf32>
    %c0_14 = arith.constant 0 : index
    %c0_15 = arith.constant 0 : index
    %c0_16 = arith.constant 0 : index
    %23 = vector.load %arg5[%c0_14, %c0_15, %c0_16] : memref<1x16x16xf32, #tpu.memory_space<vmem>>, vector<1x16x16xf32>
    %24 = vector.shape_cast %23 : vector<1x16x16xf32> to vector<16x16xf32>
    %25 = vector.shape_cast %22 : vector<16x16xf32> to vector<1x16x16xf32>
    tpu.vector_store %arg5[%c0_14, %c0_15, %c0_16], %25 {strides = array<i32>} : memref<1x16x16xf32, #tpu.memory_space<vmem>>, vector<1x16x16xf32>,
    return
  }
  func.func @transform_0(%arg0: i32, %arg1: i32) -> (i32, i32, i32, i32) {
    %c0_i32 = arith.constant 0 : i32
    %c0_i32_0 = arith.constant 0 : i32
    %c0_i32_1 = arith.constant 0 : i32
    return %arg0, %arg1, %c0_i32, %c0_i32_0 : i32, i32, i32, i32
  }
  func.func @transform_1(%arg0: i32, %arg1: i32) -> (i32, i32, i32) {
    %c0_i32 = arith.constant 0 : i32
    %c0_i32_0 = arith.constant 0 : i32
    %c0_i32_1 = arith.constant 0 : i32
    %c0_i32_2 = arith.constant 0 : i32
    return %c0_i32, %c0_i32_0, %c0_i32_1 : i32, i32, i32
  }
  func.func @transform_2(%arg0: i32, %arg1: i32) -> (i32, i32) {
    %c0_i32 = arith.constant 0 : i32
    %c0_i32_0 = arith.constant 0 : i32
    %c0_i32_1 = arith.constant 0 : i32
    return %c0_i32, %c0_i32_0 : i32, i32
  }
  func.func @transform_3(%arg0: i32, %arg1: i32) -> (i32, i32, i32) {
    %c0_i32 = arith.constant 0 : i32
    %c0_i32_0 = arith.constant 0 : i32
    return %arg0, %c0_i32, %arg1 : i32, i32, i32
  }
}

</mosaic_0001>

<llo_original>
// kernel: tpu_custom_call.1
$region0: #{tpu_custom_call.1}
  #allocation0 [shape = 'u32[]', space=smem, size = 0x4, offset = 0x4, fixed_abs, tag = 'smem constant byte address 0x4 - core index']
  #allocation1 [shape = 'u32[144,128]{1,0:T(1,128)}', space=vmem, size = 0x12000, scoped, tag = 'internal scratch']
  %s0 = inlined_call_operand.vmem [shape: f32[2,1,4,144], index: 0, kind: input, shape index: {}]
  %s1 = inlined_call_operand.vmem [shape: f32[3,16,4], index: 1, kind: input, shape index: {}]
  %s2 = inlined_call_operand.vmem [shape: f32[16,1], index: 2, kind: input, shape index: {}]
  %s3 = inlined_call_operand.hbm [shape: f32[2,16,16], index: 3, kind: output, shape index: {}]
  %s4 = sld [smem:[#allocation0]]
  $region45: #{tpu_custom_call.1} parent=0
    _
  %s6 = ssub.s32 1, %s4
  %s7 = scalar_select 0, %s6, %s4
  $region1: #{tpu_custom_call.1} parent=0
    #allocation2 [shape = 'u8[16384]{0}', space=vmem, size = 0x4000, scoped, tag = 'output window, operand 0']
    #allocation3 [shape = 's32[2]{0}', space=sflag, size = 0x8, scoped, tag = 'scoped memory for tpu_custom_call.1']
    %8 = vsyncpa [#allocation3], 0
    %s9 = scalar_lea.sflag [#allocation3], 1
    %10 = vsyncpa %s9, 0
    loop: start=0, step=1, limit=4
    $region2: #{tpu_custom_call.1} parent=1 // loop_pre_header
      _
    $region3: #{tpu_custom_call.1} parent=1 // loop_header
      %s12 = sphi 0, %s16
      %p13 = scmp.ge.s32.totalorder %s12, 4
      %s19 = sphi 0, %s31
      %s20 = sphi 0, %s27
      %s21 = sphi 0, %s19
      %s22 = sphi 0, %s20
      %s23 = sphi 0, %s21
      %s24 = sphi 0, %s22
      %s36 = sphi 0, %s38
      %s39 = sphi 0, %s36
      %s40 = sphi 0, %s39
      %s56 = sphi 0, %s40
      %s60 = sphi 0, %s60
      %s62 = sphi 0, %s60
      %s63 = sphi 0, %s62
      %s77 = sphi 0, %s63
      %s81 = sphi 0, %s81
      %s83 = sphi 0, %s81
      %s84 = sphi 0, %s83
      %s98 = sphi 0, %s84
      %s106 = sphi 0, %s108
      %s109 = sphi 0, %s106
      %s110 = sphi 0, %s109
      %s126 = sphi 0, %s110
    $region4: #{tpu_custom_call.1} parent=1 // loop_header_branch
      %15 = sbr.rel (%p13) target = $region8
    $region5: #{tpu_custom_call.1} parent=1 // loop_body
      %s17 = ssub.s32 %s12, 1
      %s18 = ssub.s32 %s12, 2
      %s25 = sadd.s32 1, %s20
      %p26 = scmp.ge.s32.totalorder %s25, 1
      %s27 = scalar_select %p26, 0, %s25
      %s28 = sadd.s32 1, %s19
      %s29 = scalar_select %p26, %s28, %s19
      %p30 = scmp.ge.s32.totalorder %s29, 2
      %s31 = scalar_select %p30, 0, %s29
      %s32 = ssub.s32 %s19, %s31
      %s33 = ssub.s32 %s20, %s27
      %s34 = sor.u32 %s32, %s33
      %p35 = scmp.eq.s32.totalorder %s34, 0
      %s37 = sadd.s32 %s36, 1
      %s38 = scalar_select %p35, %s36, %s37
      %p41 = pneg %p35
      %p42 = scmp.eq.s32.totalorder %s12, 1
      %p43 = por %p41, %p42
      %p44 = scmp.ne.s32.totalorder %s36, %s39
      %p45 = scmp.eq.s32.totalorder %s12, 0
      %p46 = por %p44, %p45
      %p47 = scmp.ne.s32.totalorder %s36, %s39
      %p48 = scmp.eq.s32.totalorder %s17, 1
      %p49 = por %p47, %p48
      %p50 = scmp.ne.s32.totalorder %s39, %s40
      %p51 = scmp.eq.s32.totalorder %s17, 0
      %p52 = por %p50, %p51
      %p53 = scmp.ne.s32.totalorder %s39, %s40
      %p54 = scmp.eq.s32.totalorder %s18, 1
      %p55 = por %p53, %p54
      %p57 = scmp.ne.s32.totalorder %s40, %s56
      %p58 = scmp.eq.s32.totalorder %s18, 0
      %p59 = por %p57, %p58
      %s61 = sadd.s32 %s60, 1
      %p64 = scmp.eq.s32.totalorder %s12, 1
      %p65 = scmp.ne.s32.totalorder %s60, %s62
      %p66 = scmp.eq.s32.totalorder %s12, 0
      %p67 = por %p65, %p66
      %p68 = scmp.ne.s32.totalorder %s60, %s62
      %p69 = scmp.eq.s32.totalorder %s17, 1
      %p70 = por %p68, %p69
      %p71 = scmp.ne.s32.totalorder %s62, %s63
      %p72 = scmp.eq.s32.totalorder %s17, 0
      %p73 = por %p71, %p72
      %p74 = scmp.ne.s32.totalorder %s62, %s63
      %p75 = scmp.eq.s32.totalorder %s18, 1
      %p76 = por %p74, %p75
      %p78 = scmp.ne.s32.totalorder %s63, %s77
      %p79 = scmp.eq.s32.totalorder %s18, 0
      %p80 = por %p78, %p79
      %s82 = sadd.s32 %s81, 1
      %p85 = scmp.eq.s32.totalorder %s12, 1
      %p86 = scmp.ne.s32.totalorder %s81, %s83
      %p87 = scmp.eq.s32.totalorder %s12, 0
      %p88 = por %p86, %p87
      %p89 = scmp.ne.s32.totalorder %s81, %s83
      %p90 = scmp.eq.s32.totalorder %s17, 1
      %p91 = por %p89, %p90
      %p92 = scmp.ne.s32.totalorder %s83, %s84
      %p93 = scmp.eq.s32.totalorder %s17, 0
      %p94 = por %p92, %p93
      %p95 = scmp.ne.s32.totalorder %s83, %s84
      %p96 = scmp.eq.s32.totalorder %s18, 1
      %p97 = por %p95, %p96
      %p99 = scmp.ne.s32.totalorder %s84, %s98
      %p100 = scmp.eq.s32.totalorder %s18, 0
      %p101 = por %p99, %p100
      %s102 = ssub.s32 %s19, %s31
      %s103 = ssub.s32 %s20, %s27
      %s104 = sor.u32 %s102, %s103
      %p105 = scmp.eq.s32.totalorder %s104, 0
      %s107 = sadd.s32 %s106, 1
      %s108 = scalar_select %p105, %s106, %s107
      %p111 = pneg %p105
      %p112 = scmp.eq.s32.totalorder %s12, 1
      %p113 = por %p111, %p112
      %p114 = scmp.ne.s32.totalorder %s106, %s109
      %p115 = scmp.eq.s32.totalorder %s12, 0
      %p116 = por %p114, %p115
      %p117 = scmp.ne.s32.totalorder %s106, %s109
      %p118 = scmp.eq.s32.totalorder %s17, 1
      %p119 = por %p117, %p118
      %p120 = scmp.ne.s32.totalorder %s109, %s110
      %p121 = scmp.eq.s32.totalorder %s17, 0
      %p122 = por %p120, %p121
      %p123 = scmp.ne.s32.totalorder %s109, %s110
      %p124 = scmp.eq.s32.totalorder %s18, 1
      %p125 = por %p123, %p124
      %p127 = scmp.ne.s32.totalorder %s110, %s126
      %p128 = scmp.eq.s32.totalorder %s18, 0
      %p129 = por %p127, %p128
      %p130 = scmp.le.s32.totalorder 1, %s12
      %p131 = scmp.lt.s32.totalorder %s12, 3
      %p132 = pnand %p130, %p131
      %p133 = pneg %p132
      // Predicated region
      $region9: #{tpu_custom_call.1} parent=5 // pred_check
        _
      $region10: #{tpu_custom_call.1} parent=5 // pred_check_branch
        %135 = sbr.rel (%p132) target = $region12
      $region11: #{tpu_custom_call.1} parent=5 // pred_region
        %s136 = ssub.s32 %s12, 1
        // Predicated region
        $region13: #{tpu_custom_call.1} parent=11 // pred_check
          %p137 = pneg %p73
        $region14: #{tpu_custom_call.1} parent=11 // pred_check_branch
          %139 = sbr.rel (%p137) target = $region16
        $region15: #{tpu_custom_call.1} parent=11 // pred_region
          _
        $region16: #{tpu_custom_call.1} parent=11 // pred_fallthru
          _
        // Predicated region
        $region17: #{tpu_custom_call.1} parent=11 // pred_check
          %p140 = pneg %p94
        $region18: #{tpu_custom_call.1} parent=11 // pred_check_branch
          %142 = sbr.rel (%p140) target = $region20
        $region19: #{tpu_custom_call.1} parent=11 // pred_region
          _
        $region20: #{tpu_custom_call.1} parent=11 // pred_fallthru
          _
      $region12: #{tpu_custom_call.1} parent=5 // pred_fallthru
        _
      %p143 = scmp.lt.s32.totalorder %s12, 2
      // Predicated region
      $region21: #{tpu_custom_call.1} parent=5 // pred_check
        %p144 = pneg %p143
      $region22: #{tpu_custom_call.1} parent=5 // pred_check_branch
        %146 = sbr.rel (%p144) target = $region24
      $region23: #{tpu_custom_call.1} parent=5 // pred_region
        // Predicated region
        $region25: #{tpu_custom_call.1} parent=23 // pred_check
          %p147 = pneg %p46
        $region26: #{tpu_custom_call.1} parent=23 // pred_check_branch
          %149 = sbr.rel (%p147) target = $region28
        $region27: #{tpu_custom_call.1} parent=23 // pred_region
          %p150 = scmp.lt.s32.totalorder %s19, 1
          %s151 = scalar_select %p150, %s19, 1
          %p152 = scmp.lt.s32.totalorder %s20, 0
          %s153 = scalar_select %p152, %s20, 0
          %s154 = smul.addr %s153, 2
          %s155 = smul.addr %s151, 2
          %s156 = sadd.s32 %s154, %s155
          %s157 = smul.addr %s156, 4
          %s158 = scalar_lea.vmem %s0, %s157
        $region28: #{tpu_custom_call.1} parent=23 // pred_fallthru
          _
      $region24: #{tpu_custom_call.1} parent=5 // pred_fallthru
        _
      %p159 = scmp.le.s32.totalorder 1, %s12
      %p160 = scmp.lt.s32.totalorder %s12, 3
      %p161 = pnand %p159, %p160
      %p162 = pneg %p161
      // Predicated region
      $region29: #{tpu_custom_call.1} parent=5 // pred_check
        _
      $region30: #{tpu_custom_call.1} parent=5 // pred_check_branch
        %164 = sbr.rel (%p161) target = $region32
      $region31: #{tpu_custom_call.1} parent=5 // pred_region
        %s165 = ssub.s32 %s12, 1
        %p166 = scmp.lt.s32.totalorder %s21, 1
        %s167 = scalar_select %p166, %s21, 1
        %p168 = scmp.lt.s32.totalorder %s22, 0
        %s169 = scalar_select %p168, %s22, 0
        %s170 = smul.addr %s169, 2
        %s171 = smul.addr %s167, 2
        %s172 = sadd.s32 %s170, %s171
        %s173 = smul.addr %s172, 4
        %s174 = scalar_lea.vmem %s0, %s173
        %p175 = pneg %p52
        %p176 = pneg %p49
        %p177 = pneg %p73
        %p178 = pneg %p70
        %p179 = pneg %p94
        %p180 = pneg %p91
        %p181 = pneg %p122
        %p182 = pneg %p119
        %s183 = sand.u32 %s109, 1
        %s184 = scalar_lea.sflag [#allocation3], %s183
        %s185 = sand.u32 %s109, 1
        %s186 = smul.addr %s185, 16
        %s187 = scalar_lea.vmem [#allocation2], %s186
        %p188 = scmp.lt.s32.totalorder %s21, 1
        %s189 = scalar_select %p188, %s21, 1
        %p190 = scmp.lt.s32.totalorder %s22, 0
        %s191 = scalar_select %p190, %s22, 0
        %s192 = smul.addr %s191, 2
        %s193 = smul.addr %s189, 2
        %s194 = sadd.s32 %s192, %s193
        %s195 = smul.addr %s194, 4
        %s196 = scalar_lea.vmem %s0, %s195
        %v197 = vld [vmem:[%s196] sm:$0xff]
        %v198 = vld [vmem:[%s1] sm:$0xff]
        %v199 = vld [vmem:[%s1 + $0x8] sm:$0xff]
        %v201 = vcombine.high %v197, %v197
        %202 = vrot.lane.b32.xlu0 %v197, 127
        %v203 = vpop.permute.xlu0 %202
        %204 = vrot.lane.b32.xlu0 %v201, 127
        %v205 = vpop.permute.xlu0 %204
        %vm206 = vcmask 1039360
        %v207 = vsel %vm206, %v203, %v205
        %209 = vrot.lane.b32.xlu0 %v197, 15
        %v210 = vpop.permute.xlu0 %209
        %vm212 = vcmask 121856
        %v213 = vsel %vm212, %v205, %v210
        %s214 = scalar_lea.vmem %s1, 16
        %v215 = vld [vmem:[%s214] sm:$0xff]
        %v216 = vld [vmem:[%s214 + $0x8] sm:$0xff]
        %vm217 = vcmask 31744
        %v219 = vsel %vm217, %v215, 0
        %v222 = vsel %vm217, %v216, 0
        %vm224 = vcmask 1043456
        %v225 = vsel %vm224, %v207, 0
        %v228 = vsel %vm224, %v213, 0
        %230 = vmatprep.subr.mxu0 %v228
        %231 = vmatpush1.msra.mxu0 %v225
        %232 = vmatprep.subr.mxu0 0.0
        %233 = vmatpush1.msra.mxu0 0.0
        %234 = vmatprep.subr.mxu0 0.0
        %235 = vmatpush1.msra.mxu0 0.0
        %236 = vmatprep.subr.mxu0 0.0
        %237 = vmatpush1.msra.mxu0 0.0
        %238 = vmatprep.subr.mxu0 0.0
        %239 = vmatpush1.msra.mxu0 0.0
        %240 = vmatprep.subr.mxu0 0.0
        %241 = vmatpush1.msra.mxu0 0.0
        %242 = vmatprep.subr.mxu0 0.0
        %243 = vmatpush1.msra.mxu0 0.0
        %244 = vmatprep.subr.mxu0 0.0
        %245 = vmatpush1.msra.mxu0 0.0
        %246 = vmatprep.subr.mxu0 0.0
        %247 = vmatpush1.msra.mxu0 0.0
        %248 = vmatprep.subr.mxu0 0.0
        %249 = vmatpush1.msra.mxu0 0.0
        %250 = vmatprep.subr.mxu0 0.0
        %251 = vmatpush1.msra.mxu0 0.0
        %252 = vmatprep.subr.mxu0 0.0
        %253 = vmatpush1.msra.mxu0 0.0
        %254 = vmatprep.subr.mxu0 0.0
        %255 = vmatpush1.msra.mxu0 0.0
        %256 = vmatprep.subr.mxu0 0.0
        %257 = vmatpush1.msra.mxu0 0.0
        %258 = vmatprep.subr.mxu0 0.0
        %259 = vmatpush1.msra.mxu0 0.0
        %260 = vmatprep.subr.mxu0 0.0
        %261 = vmatpush1.msra.mxu0 0.0
        %262 = vmatprep.subr.mxu0 0.0
        %263 = vmatpush1.msra.mxu0 0.0
        %264 = vmatprep.subr.mxu0 0.0
        %265 = vmatpush1.msra.mxu0 0.0
        %266 = vmatprep.subr.mxu0 0.0
        %267 = vmatpush1.msra.mxu0 0.0
        %268 = vmatprep.subr.mxu0 0.0
        %269 = vmatpush1.msra.mxu0 0.0
        %270 = vmatprep.subr.mxu0 0.0
        %271 = vmatpush1.msra.mxu0 0.0
        %272 = vmatprep.subr.mxu0 0.0
        %273 = vmatpush1.msra.mxu0 0.0
        %274 = vmatprep.subr.mxu0 0.0
        %275 = vmatpush1.msra.mxu0 0.0
        %276 = vmatprep.subr.mxu0 0.0
        %277 = vmatpush1.msra.mxu0 0.0
        %278 = vmatprep.subr.mxu0 0.0
        %279 = vmatpush1.msra.mxu0 0.0
        %280 = vmatprep.subr.mxu0 0.0
        %281 = vmatpush1.msra.mxu0 0.0
        %282 = vmatprep.subr.mxu0 0.0
        %283 = vmatpush1.msra.mxu0 0.0
        %284 = vmatprep.subr.mxu0 0.0
        %285 = vmatpush1.msra.mxu0 0.0
        %286 = vmatprep.subr.mxu0 0.0
        %287 = vmatpush1.msra.mxu0 0.0
        %288 = vmatprep.subr.mxu0 0.0
        %289 = vmatpush1.msra.mxu0 0.0
        %290 = vmatprep.subr.mxu0 0.0
        %291 = vmatpush1.msra.mxu0 0.0
        %292 = vmatprep.subr.mxu0 0.0
        %293 = vmatpush1.msra.mxu0 0.0
        %294 = vmatprep.mubr.f32.mxu0 0.0
        %295 = vmatmul.mubr.f32.gmra.mrb[0].mxu0 %v219
        %v296 = vpop.f32.mrb[0].mxu0
        %v297 = vadd.f32 0.0, %v296
        %v298 = vpop.f32.mrb[0].mxu0
        %299 = vmatprep.mubr.f32.mxu0 0.0
        %300 = vmatmul.mubr.f32.gmra.mrb[0].mxu0 %v222
        %v301 = vpop.f32.mrb[0].mxu0
        %v302 = vadd.f32 0.0, %v301
        %v303 = vpop.f32.mrb[0].mxu0
        %304 = vdwg.mxu0
        %v306 = vsel %vm217, %v198, 0
        %v309 = vsel %vm217, %v199, 0
        %v311 = vsel %vm224, %v197, 0
        %v313 = vsel %vm224, %v201, 0
        %315 = vmatprep.subr.mxu0 %v313
        %316 = vmatpush1.msra.mxu0 %v311
        %317 = vmatprep.subr.mxu0 0.0
        %318 = vmatpush1.msra.mxu0 0.0
        %319 = vmatprep.subr.mxu0 0.0
        %320 = vmatpush1.msra.mxu0 0.0
        %321 = vmatprep.subr.mxu0 0.0
        %322 = vmatpush1.msra.mxu0 0.0
        %323 = vmatprep.subr.mxu0 0.0
        %324 = vmatpush1.msra.mxu0 0.0
        %325 = vmatprep.subr.mxu0 0.0
        %326 = vmatpush1.msra.mxu0 0.0
        %327 = vmatprep.subr.mxu0 0.0
        %328 = vmatpush1.msra.mxu0 0.0
        %329 = vmatprep.subr.mxu0 0.0
        %330 = vmatpush1.msra.mxu0 0.0
        %331 = vmatprep.subr.mxu0 0.0
        %332 = vmatpush1.msra.mxu0 0.0
        %333 = vmatprep.subr.mxu0 0.0
        %334 = vmatpush1.msra.mxu0 0.0
        %335 = vmatprep.subr.mxu0 0.0
        %336 = vmatpush1.msra.mxu0 0.0
        %337 = vmatprep.subr.mxu0 0.0
        %338 = vmatpush1.msra.mxu0 0.0
        %339 = vmatprep.subr.mxu0 0.0
        %340 = vmatpush1.msra.mxu0 0.0
        %341 = vmatprep.subr.mxu0 0.0
        %342 = vmatpush1.msra.mxu0 0.0
        %343 = vmatprep.subr.mxu0 0.0
        %344 = vmatpush1.msra.mxu0 0.0
        %345 = vmatprep.subr.mxu0 0.0
        %346 = vmatpush1.msra.mxu0 0.0
        %347 = vmatprep.subr.mxu0 0.0
        %348 = vmatpush1.msra.mxu0 0.0
        %349 = vmatprep.subr.mxu0 0.0
        %350 = vmatpush1.msra.mxu0 0.0
        %351 = vmatprep.subr.mxu0 0.0
        %352 = vmatpush1.msra.mxu0 0.0
        %353 = vmatprep.subr.mxu0 0.0
        %354 = vmatpush1.msra.mxu0 0.0
        %355 = vmatprep.subr.mxu0 0.0
        %356 = vmatpush1.msra.mxu0 0.0
        %357 = vmatprep.subr.mxu0 0.0
        %358 = vmatpush1.msra.mxu0 0.0
        %359 = vmatprep.subr.mxu0 0.0
        %360 = vmatpush1.msra.mxu0 0.0
        %361 = vmatprep.subr.mxu0 0.0
        %362 = vmatpush1.msra.mxu0 0.0
        %363 = vmatprep.subr.mxu0 0.0
        %364 = vmatpush1.msra.mxu0 0.0
        %365 = vmatprep.subr.mxu0 0.0
        %366 = vmatpush1.msra.mxu0 0.0
        %367 = vmatprep.subr.mxu0 0.0
        %368 = vmatpush1.msra.mxu0 0.0
        %369 = vmatprep.subr.mxu0 0.0
        %370 = vmatpush1.msra.mxu0 0.0
        %371 = vmatprep.subr.mxu0 0.0
        %372 = vmatpush1.msra.mxu0 0.0
        %373 = vmatprep.subr.mxu0 0.0
        %374 = vmatpush1.msra.mxu0 0.0
        %375 = vmatprep.subr.mxu0 0.0
        %376 = vmatpush1.msra.mxu0 0.0
        %377 = vmatprep.subr.mxu0 0.0
        %378 = vmatpush1.msra.mxu0 0.0
        %379 = vmatprep.mubr.f32.mxu0 0.0
        %380 = vmatmul.mubr.f32.gmra.mrb[0].mxu0 %v306
        %v381 = vpop.f32.mrb[0].mxu0
        %v382 = vadd.f32 %v297, %v381
        %v383 = vpop.f32.mrb[0].mxu0
        %384 = vmatprep.mubr.f32.mxu0 0.0
        %385 = vmatmul.mubr.f32.gmra.mrb[0].mxu0 %v309
        %v386 = vpop.f32.mrb[0].mxu0
        %v387 = vadd.f32 %v302, %v386
        %v388 = vpop.f32.mrb[0].mxu0
        %389 = vdwg.mxu0
        %390 = vrot.lane.b32.xlu0 %v197, 126
        %v391 = vpop.permute.xlu0 %390
        %392 = vrot.lane.b32.xlu0 %v201, 126
        %v393 = vpop.permute.xlu0 %392
        %vm394 = vcmask 1031168
        %v395 = vsel %vm394, %v391, %v393
        %397 = vrot.lane.b32.xlu0 %v197, 14
        %v398 = vpop.permute.xlu0 %397
        %vm400 = vcmask 113664
        %v401 = vsel %vm400, %v393, %v398
        %s402 = scalar_lea.vmem %s1, 32
        %v403 = vld [vmem:[%s402] sm:$0xff]
        %v404 = vld [vmem:[%s402 + $0x8] sm:$0xff]
        %v406 = vsel %vm217, %v403, 0
        %v409 = vsel %vm217, %v404, 0
        %v411 = vsel %vm224, %v395, 0
        %v414 = vsel %vm224, %v401, 0
        %416 = vmatprep.subr.mxu0 %v414
        %417 = vmatpush1.msra.mxu0 %v411
        %418 = vmatprep.subr.mxu0 0.0
        %419 = vmatpush1.msra.mxu0 0.0
        %420 = vmatprep.subr.mxu0 0.0
        %421 = vmatpush1.msra.mxu0 0.0
        %422 = vmatprep.subr.mxu0 0.0
        %423 = vmatpush1.msra.mxu0 0.0
        %424 = vmatprep.subr.mxu0 0.0
        %425 = vmatpush1.msra.mxu0 0.0
        %426 = vmatprep.subr.mxu0 0.0
        %427 = vmatpush1.msra.mxu0 0.0
        %428 = vmatprep.subr.mxu0 0.0
        %429 = vmatpush1.msra.mxu0 0.0
        %430 = vmatprep.subr.mxu0 0.0
        %431 = vmatpush1.msra.mxu0 0.0
        %432 = vmatprep.subr.mxu0 0.0
        %433 = vmatpush1.msra.mxu0 0.0
        %434 = vmatprep.subr.mxu0 0.0
        %435 = vmatpush1.msra.mxu0 0.0
        %436 = vmatprep.subr.mxu0 0.0
        %437 = vmatpush1.msra.mxu0 0.0
        %438 = vmatprep.subr.mxu0 0.0
        %439 = vmatpush1.msra.mxu0 0.0
        %440 = vmatprep.subr.mxu0 0.0
        %441 = vmatpush1.msra.mxu0 0.0
        %442 = vmatprep.subr.mxu0 0.0
        %443 = vmatpush1.msra.mxu0 0.0
        %444 = vmatprep.subr.mxu0 0.0
        %445 = vmatpush1.msra.mxu0 0.0
        %446 = vmatprep.subr.mxu0 0.0
        %447 = vmatpush1.msra.mxu0 0.0
        %448 = vmatprep.subr.mxu0 0.0
        %449 = vmatpush1.msra.mxu0 0.0
        %450 = vmatprep.subr.mxu0 0.0
        %451 = vmatpush1.msra.mxu0 0.0
        %452 = vmatprep.subr.mxu0 0.0
        %453 = vmatpush1.msra.mxu0 0.0
        %454 = vmatprep.subr.mxu0 0.0
        %455 = vmatpush1.msra.mxu0 0.0
        %456 = vmatprep.subr.mxu0 0.0
        %457 = vmatpush1.msra.mxu0 0.0
        %458 = vmatprep.subr.mxu0 0.0
        %459 = vmatpush1.msra.mxu0 0.0
        %460 = vmatprep.subr.mxu0 0.0
        %461 = vmatpush1.msra.mxu0 0.0
        %462 = vmatprep.subr.mxu0 0.0
        %463 = vmatpush1.msra.mxu0 0.0
        %464 = vmatprep.subr.mxu0 0.0
        %465 = vmatpush1.msra.mxu0 0.0
        %466 = vmatprep.subr.mxu0 0.0
        %467 = vmatpush1.msra.mxu0 0.0
        %468 = vmatprep.subr.mxu0 0.0
        %469 = vmatpush1.msra.mxu0 0.0
        %470 = vmatprep.subr.mxu0 0.0
        %471 = vmatpush1.msra.mxu0 0.0
        %472 = vmatprep.subr.mxu0 0.0
        %473 = vmatpush1.msra.mxu0 0.0
        %474 = vmatprep.subr.mxu0 0.0
        %475 = vmatpush1.msra.mxu0 0.0
        %476 = vmatprep.subr.mxu0 0.0
        %477 = vmatpush1.msra.mxu0 0.0
        %478 = vmatprep.subr.mxu0 0.0
        %479 = vmatpush1.msra.mxu0 0.0
        %480 = vmatprep.mubr.f32.mxu0 0.0
        %481 = vmatmul.mubr.f32.gmra.mrb[0].mxu0 %v406
        %v482 = vpop.f32.mrb[0].mxu0
        %v483 = vadd.f32 0.0, %v482
        %v484 = vpop.f32.mrb[0].mxu0
        %485 = vmatprep.mubr.f32.mxu0 0.0
        %486 = vmatmul.mubr.f32.gmra.mrb[0].mxu0 %v409
        %v487 = vpop.f32.mrb[0].mxu0
        %v488 = vadd.f32 0.0, %v487
        %v489 = vpop.f32.mrb[0].mxu0
        %490 = vdwg.mxu0
        %v491 = vadd.f32 %v382, %v483
        %v492 = vadd.f32 %v387, %v488
        %v493 = vld [vmem:[%s2] sm:$0xff]
        %v494 = vld [vmem:[%s2 + $0x8] sm:$0xff]
        %496 = vset.pattern.permute.xlu0 0
        %497 = vperm.xlu0 %496, %v493
        %v498 = vpop.permute.xlu0 %497
        %501 = vset.pattern.permute.xlu0 0
        %502 = vperm.xlu0 %501, %v494
        %v503 = vpop.permute.xlu0 %502
        %v505 = vadd.f32 %v491, %v498
        %v506 = vadd.f32 %v492, %v503
        %vm507 = vcmask 130048
        %508 = vst.msk [vmem:[%s187] sm:$0xff] %vm507, %v505
        %509 = vst.msk [vmem:[%s187 + $0x8] sm:$0xff] %vm507, %v506
        %s510 = sand.u32 %s109, 1
        %s511 = scalar_lea.sflag [#allocation3], %s510
        %s512 = sand.u32 %s109, 1
        %s513 = smul.addr %s512, 16
        %s514 = scalar_lea.vmem [#allocation2], %s513
        // Predicated region
        $region33: #{tpu_custom_call.1} parent=31 // pred_check
          %p515 = pneg %p119
        $region34: #{tpu_custom_call.1} parent=31 // pred_check_branch
          %517 = sbr.rel (%p515) target = $region36
        $region35: #{tpu_custom_call.1} parent=31 // pred_region
          %s519 = ssub.s32 256, 256
          %520 = vsyncadd %s511, %s519
          %s521 = smul.addr %s21, 2
          %s522 = sadd.s32 %s22, %s521
          %s523 = smul.addr %s522, 128
          %s524 = scalar_lea.hbm %s3, %s523
          %s525 = sshll.u32 %s514, 4
          %s526 = int_to_ptr.vmem [resolvable:$true] %s525
          %531 = dma.vmem_to_hbm [thread:$0]  %s526, 256, %s524, %s511, 128, 128, 8
        $region36: #{tpu_custom_call.1} parent=31 // pred_fallthru
          _
      $region32: #{tpu_custom_call.1} parent=5 // pred_fallthru
        _
      %p532 = scmp.le.s32.totalorder 2, %s12
      // Predicated region
      $region37: #{tpu_custom_call.1} parent=5 // pred_check
        %p533 = pneg %p532
      $region38: #{tpu_custom_call.1} parent=5 // pred_check_branch
        %535 = sbr.rel (%p533) target = $region40
      $region39: #{tpu_custom_call.1} parent=5 // pred_region
        %s536 = ssub.s32 %s12, 2
        // Predicated region
        $region41: #{tpu_custom_call.1} parent=39 // pred_check
          %p537 = pneg %p125
        $region42: #{tpu_custom_call.1} parent=39 // pred_check_branch
          %539 = sbr.rel (%p537) target = $region44
        $region43: #{tpu_custom_call.1} parent=39 // pred_region
          %s540 = sand.u32 %s110, 1
          %s541 = scalar_lea.sflag [#allocation3], %s540
          %s542 = sand.u32 %s110, 1
          %s543 = smul.addr %s542, 16
          %s544 = scalar_lea.vmem [#allocation2], %s543
          %545 = dma.done %s541, 256
        $region44: #{tpu_custom_call.1} parent=39 // pred_fallthru
          _
      $region40: #{tpu_custom_call.1} parent=5 // pred_fallthru
        _
    $region6: #{tpu_custom_call.1} parent=1 // loop_footer
      %s16 = sadd.s32 1, %s12
    $region7: #{tpu_custom_call.1} parent=1 // loop_footer_branch
      %11 = sbr.rel target = $region3
    $region8: #{tpu_custom_call.1} parent=1 // loop_exit
      _
    %546 = vsyncpa [#allocation3], 1
    %s547 = scalar_lea.sflag [#allocation3], 1
    %548 = vsyncpa %s547, 1

</llo_original>
